<compile_context>
chip_gen: v7x
topology: tpu7x:2x2x1
jax: 0.10.0
libtpu: 0.0.40
codegen_flags: <defaults>
</compile_context>

<pallas_src>
import functools

import jax
import jax.numpy as jnp
from jax.experimental import pallas as pl
from jax.experimental.pallas import tpu as pltpu

LN_EPS = 1e-5          # nn.LayerNorm default
LANE = 128             # lane width / channel padding multiple
SQRT_HALF = 0.7071067811865476


def _round_up(x, m):
    return ((x + m - 1) // m) * m


def _vmem_capacity_bytes():
    """Physical VMEM per TensorCore; conservative fallback = v7x's 64 MiB."""
    try:
        cap = getattr(pltpu.get_tpu_info(), "vmem_capacity_bytes", None)
        if cap:
            return int(cap)
    except Exception:
        pass
    return 64 * 1024 * 1024


def _spec(shape, index_map, nbuf=None):
    """BlockSpec with an explicit pipeline buffer depth.

    nbuf=1 on grid-invariant operands halves their VMEM footprint (they are
    fetched once; double-buffering buys nothing). Falls back to the default
    double-buffered spec if this Pallas build lacks pipeline_mode/Buffered.
    """
    if nbuf is not None:
        try:
            return pl.BlockSpec(shape, index_map, pipeline_mode=pl.Buffered(nbuf))
        except (AttributeError, TypeError):
            pass
    return pl.BlockSpec(shape, index_map)


def _erf_f32(z):
    # Abramowitz & Stegun 7.1.26: |error| <= 1.5e-7 (f32-exact for GELU).
    # Uses exp (EUP slot) + plain VPU ops only -> always lowers on Mosaic.
    a = jnp.abs(z)
    t = 1.0 / (1.0 + 0.3275911 * a)
    poly = t * (0.254829592 + t * (-0.284496736 + t * (1.421413741
               + t * (-1.453152027 + t * 1.061405429))))
    e = 1.0 - poly * jnp.exp(-(a * a))
    return jnp.where(z < 0.0, -e, e)


def _gelu_f32(x, approx):
    if approx:
        # tanh-GELU: routes the transcendental to the otherwise-idle EUP slot.
        return jax.nn.gelu(x, approximate=True)
    # Exact erf-based GELU: matches nn.GELU() default semantics.
    return 0.5 * x * (1.0 + _erf_f32(x * SQRT_HALF))


def _layer_norm_f32(x, gamma, beta, inv_c):
    # One-pass LN: fused sum / sum-of-squares halves the serial XLU reduction
    # passes that sit on the critical path ahead of the first matmul.
    s = jnp.sum(x, axis=-1, keepdims=True)
    sq = jnp.sum(x * x, axis=-1, keepdims=True)
    mean = s * inv_c
    var = jnp.maximum(sq * inv_c - mean * mean, 0.0)
    return (x - mean) * jax.lax.rsqrt(var + LN_EPS) * gamma + beta


# ---------------------------------------------------------------------------
# Kernels
# ---------------------------------------------------------------------------
def _res_block_resident_kernel(x_ref, gamma_ref, beta_ref, w1_ref, b1_ref,
                               w2_ref, b2_ref, o_ref, *, inv_c, approx_gelu):
    """Weights fully resident in VMEM; grid streams token tiles."""
    x = x_ref[...].astype(jnp.float32)
    xn = _layer_norm_f32(x,
                         gamma_ref[...].astype(jnp.float32),
                         beta_ref[...].astype(jnp.float32), inv_c)

    w1 = w1_ref[...]
    h = jnp.dot(xn.astype(w1.dtype), w1, preferred_element_type=jnp.float32)
    h = _gelu_f32(h + b1_ref[...].astype(jnp.float32), approx_gelu)

    w2 = w2_ref[...]
    y = jnp.dot(h.astype(w2.dtype), w2, preferred_element_type=jnp.float32)

    o_ref[...] = (xn + y + b2_ref[...].astype(jnp.float32)).astype(o_ref.dtype)


def _res_block_htiled_kernel(x_ref, gamma_ref, beta_ref, w1_ref, b1_ref,
                             w2_ref, b2_ref, o_ref, xn_ref, acc_ref, *,
                             inv_c, approx_gelu):
    """Hidden-dim tiled path: grid = (token tiles, hidden chunks)."""
    j = pl.program_id(1)

    @pl.when(j == 0)
    def _init():
        x = x_ref[...].astype(jnp.float32)
        xn_ref[...] = _layer_norm_f32(x,
                                      gamma_ref[...].astype(jnp.float32),
                                      beta_ref[...].astype(jnp.float32), inv_c)
        acc_ref[...] = jnp.zeros_like(acc_ref)

    w1 = w1_ref[...]                                    # (Cp, tn) slice
    h = jnp.dot(xn_ref[...].astype(w1.dtype), w1,
                preferred_element_type=jnp.float32)
    h = _gelu_f32(h + b1_ref[...].astype(jnp.float32), approx_gelu)

    w2 = w2_ref[...]                                    # (tn, Cp) slice
    acc_ref[...] += jnp.dot(h.astype(w2.dtype), w2,
                            preferred_element_type=jnp.float32)

    @pl.when(j == pl.num_programs(1) - 1)
    def _finalize():
        o_ref[...] = (xn_ref[...] + acc_ref[...]
                      + b2_ref[...].astype(jnp.float32)).astype(o_ref.dtype)


# ---------------------------------------------------------------------------
# Host-side wrapper
# ---------------------------------------------------------------------------
def prepare_params(gamma, beta, w1, b1, w2, b2, *, compute_dtype=jnp.bfloat16):
    """One-time (load-time) preprocessing, outside the jitted hot path:
       * transpose PyTorch Linear weights to (in, out) so the kernel runs x @ W,
       * cast matmul weights to the MXU compute dtype (bf16), keep LN affine
         and biases in f32,
       * zero-pad channels to a multiple of 128 lanes (numerically inert: the
         kernel divides LN sums by the true channel count and padded lanes
         carry gamma = beta = bias = 0)."""
    gamma = jnp.asarray(gamma, jnp.float32)
    beta = jnp.asarray(beta, jnp.float32)
    w1 = jnp.asarray(w1, jnp.float32)
    b1 = jnp.asarray(b1, jnp.float32)
    w2 = jnp.asarray(w2, jnp.float32)
    b2 = jnp.asarray(b2, jnp.float32)

    C = gamma.shape[0]
    Cp = _round_up(C, LANE)
    pad_v = ((0, Cp - C),)
    pad_m = ((0, Cp - C), (0, Cp - C))
    return (
        jnp.pad(gamma, pad_v).reshape(1, Cp),
        jnp.pad(beta, pad_v).reshape(1, Cp),
        jnp.pad(w1.T, pad_m).astype(compute_dtype),    # (in, out), padded
        jnp.pad(b1, pad_v).reshape(1, Cp),
        jnp.pad(w2.T, pad_m).astype(compute_dtype),    # (in, out), padded
        jnp.pad(b2, pad_v).reshape(1, Cp),
    )


@functools.partial(jax.jit, static_argnames=("approx_gelu", "force_path"))
def simple_res_block(x, gamma2, beta2, w1t, b1_2, w2t, b2_2, *,
                     approx_gelu=False, force_path=None):
    """x: (..., C); params must come from prepare_params()."""
    orig_shape = x.shape
    C = orig_shape[-1]
    Cp = gamma2.shape[-1]
    xt = x.reshape(-1, C)
    T = xt.shape[0]

    xbytes = x.dtype.itemsize
    wbytes = w1t.dtype.itemsize

    cap = _vmem_capacity_bytes()
    budget = int(0.85 * cap)      # leave headroom for Mosaic internal scratch

    # ---- token tile: large tiles in the HBM-bound regime (small C, weights
    # resident so x/out are the only streaming traffic), MXU-sized otherwise.
    tm_pref = 1024 if Cp <= 512 else 256
    tm_eff = max(8, min(_round_up(tm_pref, 8), _round_up(T, 8)))
    # Guarantee >= 2 grid steps so both v7x TensorCores get work (negligible
    # extra per-step overhead on single-TC v5e/v6e).
    if _round_up(T, tm_eff) == tm_eff and tm_eff >= 16:
        tm_eff = _round_up(tm_eff // 2, 8)
    T_pad = _round_up(T, tm_eff)
    grid_m = T_pad // tm_eff

    if T_pad != T or Cp != C:
        xt = jnp.pad(xt, ((0, T_pad - T), (0, Cp - C)))

    # Deeper x pipeline only when memory-bound; never more buffers than steps.
    x_buf = max(1, min(3 if Cp <= 512 else 2, grid_m))

    # ---- path selection: resident CxC weights vs hidden-dim streaming. ----
    resident_bytes = (2 * Cp * Cp * wbytes                 # 2 weights, 1 buffer
                      + (x_buf + 2) * tm_eff * Cp * xbytes  # x + out tiles
                      + 4 * tm_eff * Cp * 4                 # f32 intermediates
                      + 12 * Cp * 4)
    use_resident = resident_bytes <= budget
    if force_path == "resident":
        use_resident = True
    elif force_path == "tiled":
        use_resident = False

    inv_c = 1.0 / float(C)

    if use_resident:
        kernel = functools.partial(_res_block_resident_kernel,
                                   inv_c=inv_c, approx_gelu=approx_gelu)
        grid = (grid_m,)
        in_specs = [
            _spec((tm_eff, Cp), lambda i: (i, 0), nbuf=x_buf),   # x tile
            _spec((1, Cp), lambda i: (0, 0), nbuf=1),            # gamma
            _spec((1, Cp), lambda i: (0, 0), nbuf=1),            # beta
            _spec((Cp, Cp), lambda i: (0, 0), nbuf=1),           # w1^T (bf16)
            _spec((1, Cp), lambda i: (0, 0), nbuf=1),            # b1
            _spec((Cp, Cp), lambda i: (0, 0), nbuf=1),           # w2^T (bf16)
            _spec((1, Cp), lambda i: (0, 0), nbuf=1),            # b2
        ]
        out_specs = pl.BlockSpec((tm_eff, Cp), lambda i: (i, 0))
        scratch_shapes = []
        dim_sem = ("parallel",)
        bytes_accessed = 2 * T_pad * Cp * xbytes + 2 * Cp * Cp * wbytes + 16 * Cp * 4
    else:
        # hidden-chunk size: largest of 512/256/128 dividing the padded C
        tn = 128
        for cand in (512, 256):
            if Cp % cand == 0:
                tn = cand
                break
        kernel = functools.partial(_res_block_htiled_kernel,
                                   inv_c=inv_c, approx_gelu=approx_gelu)
        grid = (grid_m, Cp // tn)
        in_specs = [
            pl.BlockSpec((tm_eff, Cp), lambda i, j: (i, 0)),     # x tile
            _spec((1, Cp), lambda i, j: (0, 0), nbuf=1),         # gamma
            _spec((1, Cp), lambda i, j: (0, 0), nbuf=1),         # beta
            pl.BlockSpec((Cp, tn), lambda i, j: (0, j)),         # w1^T slice
            pl.BlockSpec((1, tn), lambda i, j: (0, j)),          # b1 slice
            pl.BlockSpec((tn, Cp), lambda i, j: (j, 0)),         # w2^T slice
            _spec((1, Cp), lambda i, j: (0, 0), nbuf=1),         # b2
        ]
        out_specs = pl.BlockSpec((tm_eff, Cp), lambda i, j: (i, 0))
        scratch_shapes = [pltpu.VMEM((tm_eff, Cp), jnp.float32),   # xn
                          pltpu.VMEM((tm_eff, Cp), jnp.float32)]   # accumulator
        dim_sem = ("parallel", "arbitrary")
        bytes_accessed = (2 * T_pad * Cp * xbytes
                          + grid_m * 2 * Cp * Cp * wbytes + 16 * Cp * 4)

    cost = pl.CostEstimate(flops=4 * T_pad * Cp * Cp,        # two CxC matmuls
                           transcendentals=T_pad * Cp,        # exp in GELU
                           bytes_accessed=int(bytes_accessed))

    out = pl.pallas_call(
        kernel,
        out_shape=jax.ShapeDtypeStruct((T_pad, Cp), x.dtype),
        grid_spec=pltpu.PrefetchScalarGridSpec(
            num_scalar_prefetch=0,
            grid=grid,
            in_specs=in_specs,
            out_specs=out_specs,
            scratch_shapes=scratch_shapes),
        compiler_params=pltpu.CompilerParams(
            dimension_semantics=dim_sem,
            vmem_limit_bytes=budget),
        cost_estimate=cost,
    )(xt, gamma2, beta2, w1t, b1_2, w2t, b2_2)

    out = out[:T, :C]
    return out.reshape(orig_shape)


# ---------------------------------------------------------------------------
# Reference & demo
# ---------------------------------------------------------------------------
def _reference(x, gamma, beta, w1, b1, w2, b2):
    xf = x.astype(jnp.float32)
    mean = jnp.mean(xf, axis=-1, keepdims=True)
    var = jnp.mean((xf - mean) ** 2, axis=-1, keepdims=True)
    xn = (xf - mean) * jax.lax.rsqrt(var + LN_EPS) * gamma + beta
    h = jax.nn.gelu(xn @ w1.T + b1, approximate=False)
    y = h @ w2.T + b2
    return (xn + y).astype(x.dtype)


if __name__ == "__main__":
    B, S, C = 2, 8, 32   # channels = hidden size of SimpleResBlock
    key = jax.random.PRNGKey(0)
    kx, kg, kb, kw1, kb1, kw2, kb2 = jax.random.split(key, 7)

    x = jax.random.normal(kx, (B, S, C), dtype=jnp.float32)
    gamma = 1.0 + 0.1 * jax.random.normal(kg, (C,), dtype=jnp.float32)
    beta = 0.1 * jax.random.normal(kb, (C,), dtype=jnp.float32)
    w1 = 0.1 * jax.random.normal(kw1, (C, C), dtype=jnp.float32)
    b1 = 0.1 * jax.random.normal(kb1, (C,), dtype=jnp.float32)
    w2 = 0.1 * jax.random.normal(kw2, (C, C), dtype=jnp.float32)
    b2 = 0.1 * jax.random.normal(kb2, (C,), dtype=jnp.float32)

    # One-time weight preprocessing (transpose + bf16 cast + lane padding).
    params = prepare_params(gamma, beta, w1, b1, w2, b2)
    params = jax.tree_util.tree_map(jax.block_until_ready, params)

    ref = _reference(x, gamma, beta, w1, b1, w2, b2)

    # Auto path (resident weights at this size).
    out = simple_res_block(x, *params)
    jax.block_until_ready(out)
    assert out.shape == x.shape
    # bf16 MXU weights (f32 accumulation) -> relaxed tolerance vs f32 reference.
    assert jnp.allclose(out, ref, atol=3e-2, rtol=3e-2), "resident path mismatch"

    # Also exercise the hidden-dim-tiled path (used for large C, e.g. on v7x).
    out_t = simple_res_block(x, *params, force_path="tiled")
    jax.block_until_ready(out_t)
    assert jnp.allclose(out_t, ref, atol=3e-2, rtol=3e-2), "tiled path mismatch"

    print("KERNEL_OK")
</pallas_src>

<mosaic_0001>
module attributes {stable_mosaic.version = 11 : i64} {
  func.func @_res_block_resident_kernel(%arg0: i32, %arg1: memref<8x128xf32, #tpu.memory_space<vmem>>, %arg2: memref<1x128xf32, #tpu.memory_space<vmem>>, %arg3: memref<1x128xf32, #tpu.memory_space<vmem>>, %arg4: memref<128x128xbf16, #tpu.memory_space<vmem>>, %arg5: memref<1x128xf32, #tpu.memory_space<vmem>>, %arg6: memref<128x128xbf16, #tpu.memory_space<vmem>>, %arg7: memref<1x128xf32, #tpu.memory_space<vmem>>, %arg8: memref<8x128xf32, #tpu.memory_space<vmem>>) attributes {dimension_semantics = [#tpu.dimension_semantics<parallel>], iteration_bounds = array<i64: 2>, scalar_prefetch = 0 : i64, scratch_operands = 0 : i64, tpu.core_type = #tpu.core_type<tc>, window_params = [{pipeline_mode = #tpu.pipeline_mode<double_buffered>, transform_indices = @transform_0, window_bounds = array<i64: 8, 128>}, {pipeline_mode = #tpu.pipeline_mode<synchronous>, transform_indices = @transform_1, window_bounds = array<i64: 1, 128>}, {pipeline_mode = #tpu.pipeline_mode<synchronous>, transform_indices = @transform_2, window_bounds = array<i64: 1, 128>}, {pipeline_mode = #tpu.pipeline_mode<synchronous>, transform_indices = @transform_3, window_bounds = array<i64: 128, 128>}, {pipeline_mode = #tpu.pipeline_mode<synchronous>, transform_indices = @transform_4, window_bounds = array<i64: 1, 128>}, {pipeline_mode = #tpu.pipeline_mode<synchronous>, transform_indices = @transform_5, window_bounds = array<i64: 128, 128>}, {pipeline_mode = #tpu.pipeline_mode<synchronous>, transform_indices = @transform_6, window_bounds = array<i64: 1, 128>}, {transform_indices = @transform_7, window_bounds = array<i64: 8, 128>}]} {
    %c0 = arith.constant 0 : index
    %c0_0 = arith.constant 0 : index
    %0 = vector.load %arg1[%c0, %c0_0] : memref<8x128xf32, #tpu.memory_space<vmem>>, vector<8x128xf32>
    %c0_1 = arith.constant 0 : index
    %c0_2 = arith.constant 0 : index
    %1 = vector.load %arg2[%c0_1, %c0_2] : memref<1x128xf32, #tpu.memory_space<vmem>>, vector<1x128xf32>
    %c0_3 = arith.constant 0 : index
    %c0_4 = arith.constant 0 : index
    %2 = vector.load %arg3[%c0_3, %c0_4] : memref<1x128xf32, #tpu.memory_space<vmem>>, vector<1x128xf32>
    %cst = arith.constant dense<0.000000e+00> : vector<8xf32>
    %3 = vector.multi_reduction <add>, %0, %cst [1] : vector<8x128xf32> to vector<8xf32>
    %4 = vector.shape_cast %3 : vector<8xf32> to vector<8x1xf32>
    %5 = arith.mulf %0, %0 : vector<8x128xf32>
    %cst_5 = arith.constant dense<0.000000e+00> : vector<8xf32>
    %6 = vector.multi_reduction <add>, %5, %cst_5 [1] : vector<8x128xf32> to vector<8xf32>
    %7 = vector.shape_cast %6 : vector<8xf32> to vector<8x1xf32>
    %cst_6 = arith.constant 3.125000e-02 : f32
    %8 = vector.broadcast %cst_6 : f32 to vector<8x1xf32>
    %9 = arith.mulf %4, %8 : vector<8x1xf32>
    %cst_7 = arith.constant 3.125000e-02 : f32
    %10 = vector.broadcast %cst_7 : f32 to vector<8x1xf32>
    %11 = arith.mulf %7, %10 : vector<8x1xf32>
    %12 = arith.mulf %9, %9 : vector<8x1xf32>
    %13 = arith.subf %11, %12 : vector<8x1xf32>
    %cst_8 = arith.constant 0.000000e+00 : f32
    %14 = vector.broadcast %cst_8 : f32 to vector<8x1xf32>
    %15 = arith.maximumf %13, %14 : vector<8x1xf32>
    %16 = vector.broadcast %9 : vector<8x1xf32> to vector<8x128xf32>
    %17 = arith.subf %0, %16 : vector<8x128xf32>
    %cst_9 = arith.constant 9.99999974E-6 : f32
    %18 = vector.broadcast %cst_9 : f32 to vector<8x1xf32>
    %19 = arith.addf %15, %18 : vector<8x1xf32>
    %20 = math.rsqrt %19 : vector<8x1xf32>
    %21 = vector.broadcast %20 : vector<8x1xf32> to vector<8x128xf32>
    %22 = arith.mulf %17, %21 : vector<8x128xf32>
    %23 = vector.broadcast %1 : vector<1x128xf32> to vector<8x128xf32>
    %24 = arith.mulf %22, %23 : vector<8x128xf32>
    %25 = vector.broadcast %2 : vector<1x128xf32> to vector<8x128xf32>
    %26 = arith.addf %24, %25 : vector<8x128xf32>
    %c0_10 = arith.constant 0 : index
    %c0_11 = arith.constant 0 : index
    %27 = vector.load %arg4[%c0_10, %c0_11] : memref<128x128xbf16, #tpu.memory_space<vmem>>, vector<128x128xbf16>
    %28 = arith.truncf %26 : vector<8x128xf32> to vector<8x128xbf16>
    %cst_12 = arith.constant dense<0.000000e+00> : vector<8x128xf32>
    %29 = tpu.matmul %28, %27, %cst_12 {dimension_numbers = #tpu.dot_dimension_numbers<[1], [0], [0], [1], [0, 0, 1, 1], [], []>} : vector<8x128xbf16>, vector<128x128xbf16>, vector<8x128xf32> -> vector<8x128xf32>
    %c0_13 = arith.constant 0 : index
    %c0_14 = arith.constant 0 : index
    %30 = vector.load %arg5[%c0_13, %c0_14] : memref<1x128xf32, #tpu.memory_space<vmem>>, vector<1x128xf32>
    %31 = vector.broadcast %30 : vector<1x128xf32> to vector<8x128xf32>
    %32 = arith.addf %29, %31 : vector<8x128xf32>
    %cst_15 = arith.constant 5.000000e-01 : f32
    %33 = vector.broadcast %cst_15 : f32 to vector<8x128xf32>
    %34 = arith.mulf %33, %32 : vector<8x128xf32>
    %cst_16 = arith.constant 0.707106769 : f32
    %35 = vector.broadcast %cst_16 : f32 to vector<8x128xf32>
    %36 = arith.mulf %32, %35 : vector<8x128xf32>
    %37 = math.absf %36 : vector<8x128xf32>
    %cst_17 = arith.constant 0.327591091 : f32
    %38 = vector.broadcast %cst_17 : f32 to vector<8x128xf32>
    %39 = arith.mulf %38, %37 : vector<8x128xf32>
    %cst_18 = arith.constant 1.000000e+00 : f32
    %40 = vector.broadcast %cst_18 : f32 to vector<8x128xf32>
    %41 = arith.addf %40, %39 : vector<8x128xf32>
    %cst_19 = arith.constant 1.000000e+00 : f32
    %42 = vector.broadcast %cst_19 : f32 to vector<8x128xf32>
    %43 = arith.divf %42, %41 : vector<8x128xf32>
    %cst_20 = arith.constant 1.06140542 : f32
    %44 = vector.broadcast %cst_20 : f32 to vector<8x128xf32>
    %45 = arith.mulf %43, %44 : vector<8x128xf32>
    %cst_21 = arith.constant -1.45315206 : f32
    %46 = vector.broadcast %cst_21 : f32 to vector<8x128xf32>
    %47 = arith.addf %46, %45 : vector<8x128xf32>
    %48 = arith.mulf %43, %47 : vector<8x128xf32>
    %cst_22 = arith.constant 1.42141378 : f32
    %49 = vector.broadcast %cst_22 : f32 to vector<8x128xf32>
    %50 = arith.addf %49, %48 : vector<8x128xf32>
    %51 = arith.mulf %43, %50 : vector<8x128xf32>
    %cst_23 = arith.constant -0.284496725 : f32
    %52 = vector.broadcast %cst_23 : f32 to vector<8x128xf32>
    %53 = arith.addf %52, %51 : vector<8x128xf32>
    %54 = arith.mulf %43, %53 : vector<8x128xf32>
    %cst_24 = arith.constant 0.254829586 : f32
    %55 = vector.broadcast %cst_24 : f32 to vector<8x128xf32>
    %56 = arith.addf %55, %54 : vector<8x128xf32>
    %57 = arith.mulf %43, %56 : vector<8x128xf32>
    %58 = arith.mulf %37, %37 : vector<8x128xf32>
    %cst_25 = arith.constant 0.000000e+00 : f32
    %59 = vector.broadcast %cst_25 : f32 to vector<8x128xf32>
    %60 = arith.subf %59, %58 : vector<8x128xf32>
    %61 = math.exp %60 : vector<8x128xf32>
    %62 = arith.mulf %57, %61 : vector<8x128xf32>
    %cst_26 = arith.constant 1.000000e+00 : f32
    %63 = vector.broadcast %cst_26 : f32 to vector<8x128xf32>
    %64 = arith.subf %63, %62 : vector<8x128xf32>
    %cst_27 = arith.constant 0.000000e+00 : f32
    %65 = vector.broadcast %cst_27 : f32 to vector<8x128xf32>
    %66 = arith.cmpf olt, %36, %65 : vector<8x128xf32>
    %cst_28 = arith.constant 0.000000e+00 : f32
    %67 = vector.broadcast %cst_28 : f32 to vector<8x128xf32>
    %68 = arith.subf %67, %64 : vector<8x128xf32>
    %69 = arith.select %66, %68, %64 : vector<8x128xi1>, vector<8x128xf32>
    %cst_29 = arith.constant 1.000000e+00 : f32
    %70 = vector.broadcast %cst_29 : f32 to vector<8x128xf32>
    %71 = arith.addf %70, %69 : vector<8x128xf32>
    %72 = arith.mulf %34, %71 : vector<8x128xf32>
    %c0_30 = arith.constant 0 : index
    %c0_31 = arith.constant 0 : index
    %73 = vector.load %arg6[%c0_30, %c0_31] : memref<128x128xbf16, #tpu.memory_space<vmem>>, vector<128x128xbf16>
    %74 = arith.truncf %72 : vector<8x128xf32> to vector<8x128xbf16>
    %cst_32 = arith.constant dense<0.000000e+00> : vector<8x128xf32>
    %75 = tpu.matmul %74, %73, %cst_32 {dimension_numbers = #tpu.dot_dimension_numbers<[1], [0], [0], [1], [0, 0, 1, 1], [], []>} : vector<8x128xbf16>, vector<128x128xbf16>, vector<8x128xf32> -> vector<8x128xf32>
    %76 = arith.addf %26, %75 : vector<8x128xf32>
    %c0_33 = arith.constant 0 : index
    %c0_34 = arith.constant 0 : index
    %77 = vector.load %arg7[%c0_33, %c0_34] : memref<1x128xf32, #tpu.memory_space<vmem>>, vector<1x128xf32>
    %78 = vector.broadcast %77 : vector<1x128xf32> to vector<8x128xf32>
    %79 = arith.addf %76, %78 : vector<8x128xf32>
    %c0_35 = arith.constant 0 : index
    %c0_36 = arith.constant 0 : index
    %80 = vector.load %arg8[%c0_35, %c0_36] : memref<8x128xf32, #tpu.memory_space<vmem>>, vector<8x128xf32>
    tpu.vector_store %arg8[%c0_35, %c0_36], %79 {strides = array<i32>} : memref<8x128xf32, #tpu.memory_space<vmem>>, vector<8x128xf32>,
    return
  }
  func.func @transform_0(%arg0: i32) -> (i32, i32) {
    %c0_i32 = arith.constant 0 : i32
    %c0_i32_0 = arith.constant 0 : i32
    return %arg0, %c0_i32 : i32, i32
  }
  func.func @transform_1(%arg0: i32) -> (i32, i32) {
    %c0_i32 = arith.constant 0 : i32
    %c0_i32_0 = arith.constant 0 : i32
    %c0_i32_1 = arith.constant 0 : i32
    return %c0_i32, %c0_i32_0 : i32, i32
  }
  func.func @transform_2(%arg0: i32) -> (i32, i32) {
    %c0_i32 = arith.constant 0 : i32
    %c0_i32_0 = arith.constant 0 : i32
    %c0_i32_1 = arith.constant 0 : i32
    return %c0_i32, %c0_i32_0 : i32, i32
  }
  func.func @transform_3(%arg0: i32) -> (i32, i32) {
    %c0_i32 = arith.constant 0 : i32
    %c0_i32_0 = arith.constant 0 : i32
    %c0_i32_1 = arith.constant 0 : i32
    return %c0_i32, %c0_i32_0 : i32, i32
  }
  func.func @transform_4(%arg0: i32) -> (i32, i32) {
    %c0_i32 = arith.constant 0 : i32
    %c0_i32_0 = arith.constant 0 : i32
    %c0_i32_1 = arith.constant 0 : i32
    return %c0_i32, %c0_i32_0 : i32, i32
  }
  func.func @transform_5(%arg0: i32) -> (i32, i32) {
    %c0_i32 = arith.constant 0 : i32
    %c0_i32_0 = arith.constant 0 : i32
    %c0_i32_1 = arith.constant 0 : i32
    return %c0_i32, %c0_i32_0 : i32, i32
  }
  func.func @transform_6(%arg0: i32) -> (i32, i32) {
    %c0_i32 = arith.constant 0 : i32
    %c0_i32_0 = arith.constant 0 : i32
    %c0_i32_1 = arith.constant 0 : i32
    return %c0_i32, %c0_i32_0 : i32, i32
  }
  func.func @transform_7(%arg0: i32) -> (i32, i32) {
    %c0_i32 = arith.constant 0 : i32
    %c0_i32_0 = arith.constant 0 : i32
    return %arg0, %c0_i32 : i32, i32
  }
}

</mosaic_0001>

<llo_original>
// kernel: simple_res_block.1
$region0: #{simple_res_block.1}
  #allocation0 [shape = 'u32[]', space=smem, size = 0x4, offset = 0x4, fixed_abs, tag = 'smem constant byte address 0x4 - core index']
  #allocation1 [shape = 'u32[144,128]{1,0:T(1,128)}', space=vmem, size = 0x12000, scoped, tag = 'internal scratch']
  %s0 = inlined_call_operand.vmem [shape: f32[16,128], index: 0, kind: input, shape index: {}]
  %s1 = inlined_call_operand.vmem [shape: f32[1,128], index: 1, kind: input, shape index: {}]
  %s2 = inlined_call_operand.vmem [shape: f32[1,128], index: 2, kind: input, shape index: {}]
  %s3 = inlined_call_operand.hbm [shape: bf16[128,128], index: 3, kind: input, shape index: {}]
  %s4 = inlined_call_operand.vmem [shape: f32[1,128], index: 4, kind: input, shape index: {}]
  %s5 = inlined_call_operand.hbm [shape: bf16[128,128], index: 5, kind: input, shape index: {}]
  %s6 = inlined_call_operand.vmem [shape: f32[1,128], index: 6, kind: input, shape index: {}]
  %s7 = inlined_call_operand.vmem [shape: f32[16,128], index: 7, kind: output, shape index: {}]
  %s8 = sld [smem:[#allocation0]]
  $region69: #{simple_res_block.1} parent=0
    _
  %s10 = ssub.s32 1, %s8
  %s11 = scalar_select 0, %s10, %s8
  $region1: #{simple_res_block.1} parent=0
    #allocation2 [shape = 'u8[32768]{0}', space=vmem, size = 0x8000, scoped, tag = 'input window, operand 3, single buffered']
    #allocation3 [shape = 's32[2]{0}', space=sflag, size = 0x8, scoped, tag = 'scoped memory for simple_res_block.1']
    #allocation4 [shape = 'u8[32768]{0}', space=vmem, size = 0x8000, scoped, tag = 'input window, operand 5, single buffered']
    #allocation5 [shape = 's32[1]{0}', space=sflag, size = 0x4, scoped, tag = 'scoped memory for simple_res_block.1']
    %12 = vsyncpa [#allocation3], 0
    %13 = vsyncpa [#allocation5], 0
    loop: start=0, step=1, limit=4
    $region2: #{simple_res_block.1} parent=1 // loop_pre_header
      _
    $region3: #{simple_res_block.1} parent=1 // loop_header
      %s15 = sphi 0, %s19
      %p16 = scmp.ge.s32.totalorder %s15, 4
      %s25 = sphi 0, %s27
      %s28 = sphi 0, %s25
      %s29 = sphi 0, %s28
      %s45 = sphi 0, %s29
      %s49 = sphi 0, %s49
      %s51 = sphi 0, %s49
      %s52 = sphi 0, %s51
      %s66 = sphi 0, %s52
      %s70 = sphi 0, %s70
      %s72 = sphi 0, %s70
      %s73 = sphi 0, %s72
      %s87 = sphi 0, %s73
      %s91 = sphi 0, %s91
      %s93 = sphi 0, %s91
      %s94 = sphi 0, %s93
      %s108 = sphi 0, %s94
      %s112 = sphi 0, %s112
      %s114 = sphi 0, %s112
      %s115 = sphi 0, %s114
      %s129 = sphi 0, %s115
      %s133 = sphi 0, %s133
      %s135 = sphi 0, %s133
      %s136 = sphi 0, %s135
      %s150 = sphi 0, %s136
      %s154 = sphi 0, %s154
      %s156 = sphi 0, %s154
      %s157 = sphi 0, %s156
      %s171 = sphi 0, %s157
      %s177 = sphi 0, %s179
      %s180 = sphi 0, %s177
      %s181 = sphi 0, %s180
      %s197 = sphi 0, %s181
    $region4: #{simple_res_block.1} parent=1 // loop_header_branch
      %18 = sbr.rel (%p16) target = $region8
    $region5: #{simple_res_block.1} parent=1 // loop_body
      %s20 = ssub.s32 %s15, 1
      %s21 = ssub.s32 %s15, 2
      %s22 = sadd.s32 %s15, 1
      %s23 = ssub.s32 %s15, %s22
      %p24 = scmp.eq.s32.totalorder %s23, 0
      %s26 = sadd.s32 %s25, 1
      %s27 = scalar_select %p24, %s25, %s26
      %p30 = pneg %p24
      %p31 = scmp.eq.s32.totalorder %s15, 1
      %p32 = por %p30, %p31
      %p33 = scmp.ne.s32.totalorder %s25, %s28
      %p34 = scmp.eq.s32.totalorder %s15, 0
      %p35 = por %p33, %p34
      %p36 = scmp.ne.s32.totalorder %s25, %s28
      %p37 = scmp.eq.s32.totalorder %s20, 1
      %p38 = por %p36, %p37
      %p39 = scmp.ne.s32.totalorder %s28, %s29
      %p40 = scmp.eq.s32.totalorder %s20, 0
      %p41 = por %p39, %p40
      %p42 = scmp.ne.s32.totalorder %s28, %s29
      %p43 = scmp.eq.s32.totalorder %s21, 1
      %p44 = por %p42, %p43
      %p46 = scmp.ne.s32.totalorder %s29, %s45
      %p47 = scmp.eq.s32.totalorder %s21, 0
      %p48 = por %p46, %p47
      %s50 = sadd.s32 %s49, 1
      %p53 = scmp.eq.s32.totalorder %s15, 1
      %p54 = scmp.ne.s32.totalorder %s49, %s51
      %p55 = scmp.eq.s32.totalorder %s15, 0
      %p56 = por %p54, %p55
      %p57 = scmp.ne.s32.totalorder %s49, %s51
      %p58 = scmp.eq.s32.totalorder %s20, 1
      %p59 = por %p57, %p58
      %p60 = scmp.ne.s32.totalorder %s51, %s52
      %p61 = scmp.eq.s32.totalorder %s20, 0
      %p62 = por %p60, %p61
      %p63 = scmp.ne.s32.totalorder %s51, %s52
      %p64 = scmp.eq.s32.totalorder %s21, 1
      %p65 = por %p63, %p64
      %p67 = scmp.ne.s32.totalorder %s52, %s66
      %p68 = scmp.eq.s32.totalorder %s21, 0
      %p69 = por %p67, %p68
      %s71 = sadd.s32 %s70, 1
      %p74 = scmp.eq.s32.totalorder %s15, 1
      %p75 = scmp.ne.s32.totalorder %s70, %s72
      %p76 = scmp.eq.s32.totalorder %s15, 0
      %p77 = por %p75, %p76
      %p78 = scmp.ne.s32.totalorder %s70, %s72
      %p79 = scmp.eq.s32.totalorder %s20, 1
      %p80 = por %p78, %p79
      %p81 = scmp.ne.s32.totalorder %s72, %s73
      %p82 = scmp.eq.s32.totalorder %s20, 0
      %p83 = por %p81, %p82
      %p84 = scmp.ne.s32.totalorder %s72, %s73
      %p85 = scmp.eq.s32.totalorder %s21, 1
      %p86 = por %p84, %p85
      %p88 = scmp.ne.s32.totalorder %s73, %s87
      %p89 = scmp.eq.s32.totalorder %s21, 0
      %p90 = por %p88, %p89
      %s92 = sadd.s32 %s91, 1
      %p95 = scmp.eq.s32.totalorder %s15, 1
      %p96 = scmp.ne.s32.totalorder %s91, %s93
      %p97 = scmp.eq.s32.totalorder %s15, 0
      %p98 = por %p96, %p97
      %p99 = scmp.ne.s32.totalorder %s91, %s93
      %p100 = scmp.eq.s32.totalorder %s20, 1
      %p101 = por %p99, %p100
      %p102 = scmp.ne.s32.totalorder %s93, %s94
      %p103 = scmp.eq.s32.totalorder %s20, 0
      %p104 = por %p102, %p103
      %p105 = scmp.ne.s32.totalorder %s93, %s94
      %p106 = scmp.eq.s32.totalorder %s21, 1
      %p107 = por %p105, %p106
      %p109 = scmp.ne.s32.totalorder %s94, %s108
      %p110 = scmp.eq.s32.totalorder %s21, 0
      %p111 = por %p109, %p110
      %s113 = sadd.s32 %s112, 1
      %p116 = scmp.eq.s32.totalorder %s15, 1
      %p117 = scmp.ne.s32.totalorder %s112, %s114
      %p118 = scmp.eq.s32.totalorder %s15, 0
      %p119 = por %p117, %p118
      %p120 = scmp.ne.s32.totalorder %s112, %s114
      %p121 = scmp.eq.s32.totalorder %s20, 1
      %p122 = por %p120, %p121
      %p123 = scmp.ne.s32.totalorder %s114, %s115
      %p124 = scmp.eq.s32.totalorder %s20, 0
      %p125 = por %p123, %p124
      %p126 = scmp.ne.s32.totalorder %s114, %s115
      %p127 = scmp.eq.s32.totalorder %s21, 1
      %p128 = por %p126, %p127
      %p130 = scmp.ne.s32.totalorder %s115, %s129
      %p131 = scmp.eq.s32.totalorder %s21, 0
      %p132 = por %p130, %p131
      %s134 = sadd.s32 %s133, 1
      %p137 = scmp.eq.s32.totalorder %s15, 1
      %p138 = scmp.ne.s32.totalorder %s133, %s135
      %p139 = scmp.eq.s32.totalorder %s15, 0
      %p140 = por %p138, %p139
      %p141 = scmp.ne.s32.totalorder %s133, %s135
      %p142 = scmp.eq.s32.totalorder %s20, 1
      %p143 = por %p141, %p142
      %p144 = scmp.ne.s32.totalorder %s135, %s136
      %p145 = scmp.eq.s32.totalorder %s20, 0
      %p146 = por %p144, %p145
      %p147 = scmp.ne.s32.totalorder %s135, %s136
      %p148 = scmp.eq.s32.totalorder %s21, 1
      %p149 = por %p147, %p148
      %p151 = scmp.ne.s32.totalorder %s136, %s150
      %p152 = scmp.eq.s32.totalorder %s21, 0
      %p153 = por %p151, %p152
      %s155 = sadd.s32 %s154, 1
      %p158 = scmp.eq.s32.totalorder %s15, 1
      %p159 = scmp.ne.s32.totalorder %s154, %s156
      %p160 = scmp.eq.s32.totalorder %s15, 0
      %p161 = por %p159, %p160
      %p162 = scmp.ne.s32.totalorder %s154, %s156
      %p163 = scmp.eq.s32.totalorder %s20, 1
      %p164 = por %p162, %p163
      %p165 = scmp.ne.s32.totalorder %s156, %s157
      %p166 = scmp.eq.s32.totalorder %s20, 0
      %p167 = por %p165, %p166
      %p168 = scmp.ne.s32.totalorder %s156, %s157
      %p169 = scmp.eq.s32.totalorder %s21, 1
      %p170 = por %p168, %p169
      %p172 = scmp.ne.s32.totalorder %s157, %s171
      %p173 = scmp.eq.s32.totalorder %s21, 0
      %p174 = por %p172, %p173
      %s175 = ssub.s32 %s15, %s22
      %p176 = scmp.eq.s32.totalorder %s175, 0
      %s178 = sadd.s32 %s177, 1
      %s179 = scalar_select %p176, %s177, %s178
      %p182 = pneg %p176
      %p183 = scmp.eq.s32.totalorder %s15, 1
      %p184 = por %p182, %p183
      %p185 = scmp.ne.s32.totalorder %s177, %s180
      %p186 = scmp.eq.s32.totalorder %s15, 0
      %p187 = por %p185, %p186
      %p188 = scmp.ne.s32.totalorder %s177, %s180
      %p189 = scmp.eq.s32.totalorder %s20, 1
      %p190 = por %p188, %p189
      %p191 = scmp.ne.s32.totalorder %s180, %s181
      %p192 = scmp.eq.s32.totalorder %s20, 0
      %p193 = por %p191, %p192
      %p194 = scmp.ne.s32.totalorder %s180, %s181
      %p195 = scmp.eq.s32.totalorder %s21, 1
      %p196 = por %p194, %p195
      %p198 = scmp.ne.s32.totalorder %s181, %s197
      %p199 = scmp.eq.s32.totalorder %s21, 0
      %p200 = por %p198, %p199
      %p201 = scmp.le.s32.totalorder 1, %s15
      %p202 = scmp.lt.s32.totalorder %s15, 3
      %p203 = pnand %p201, %p202
      %p204 = pneg %p203
      // Predicated region
      $region9: #{simple_res_block.1} parent=5 // pred_check
        _
      $region10: #{simple_res_block.1} parent=5 // pred_check_branch
        %206 = sbr.rel (%p203) target = $region12
      $region11: #{simple_res_block.1} parent=5 // pred_region
        %s207 = ssub.s32 %s15, 1
        // Predicated region
        $region13: #{simple_res_block.1} parent=11 // pred_check
          %p208 = pneg %p62
        $region14: #{simple_res_block.1} parent=11 // pred_check_branch
          %210 = sbr.rel (%p208) target = $region16
        $region15: #{simple_res_block.1} parent=11 // pred_region
          _
        $region16: #{simple_res_block.1} parent=11 // pred_fallthru
          _
        // Predicated region
        $region17: #{simple_res_block.1} parent=11 // pred_check
          %p211 = pneg %p83
        $region18: #{simple_res_block.1} parent=11 // pred_check_branch
          %213 = sbr.rel (%p211) target = $region20
        $region19: #{simple_res_block.1} parent=11 // pred_region
          _
        $region20: #{simple_res_block.1} parent=11 // pred_fallthru
          _
        // Predicated region
        $region21: #{simple_res_block.1} parent=11 // pred_check
          %p214 = pneg %p104
        $region22: #{simple_res_block.1} parent=11 // pred_check_branch
          %216 = sbr.rel (%p214) target = $region24
        $region23: #{simple_res_block.1} parent=11 // pred_region
          %s218 = ssub.s32 1024, 1024
          %219 = vsyncadd [#allocation3], %s218
          %s220 = sshll.u32 [#allocation2], 4
          %s221 = int_to_ptr.vmem [resolvable:$true] %s220
          %226 = dma.hbm_to_vmem [thread:$0]  %s3, 1024, %s221, [#allocation3], 64, 64, 4
        $region24: #{simple_res_block.1} parent=11 // pred_fallthru
          _
        // Predicated region
        $region25: #{simple_res_block.1} parent=11 // pred_check
          %p227 = pneg %p125
        $region26: #{simple_res_block.1} parent=11 // pred_check_branch
          %229 = sbr.rel (%p227) target = $region28
        $region27: #{simple_res_block.1} parent=11 // pred_region
          _
        $region28: #{simple_res_block.1} parent=11 // pred_fallthru
          _
        // Predicated region
        $region29: #{simple_res_block.1} parent=11 // pred_check
          %p230 = pneg %p146
        $region30: #{simple_res_block.1} parent=11 // pred_check_branch
          %232 = sbr.rel (%p230) target = $region32
        $region31: #{simple_res_block.1} parent=11 // pred_region
          %s234 = ssub.s32 1024, 1024
          %235 = vsyncadd [#allocation5], %s234
          %s236 = sshll.u32 [#allocation4], 4
          %s237 = int_to_ptr.vmem [resolvable:$true] %s236
          %242 = dma.hbm_to_vmem [thread:$0]  %s5, 1024, %s237, [#allocation5], 64, 64, 4
        $region32: #{simple_res_block.1} parent=11 // pred_fallthru
          _
        // Predicated region
        $region33: #{simple_res_block.1} parent=11 // pred_check
          %p243 = pneg %p167
        $region34: #{simple_res_block.1} parent=11 // pred_check_branch
          %245 = sbr.rel (%p243) target = $region36
        $region35: #{simple_res_block.1} parent=11 // pred_region
          _
        $region36: #{simple_res_block.1} parent=11 // pred_fallthru
          _
      $region12: #{simple_res_block.1} parent=5 // pred_fallthru
        _
      %p246 = scmp.lt.s32.totalorder %s15, 2
      // Predicated region
      $region37: #{simple_res_block.1} parent=5 // pred_check
        %p247 = pneg %p246
      $region38: #{simple_res_block.1} parent=5 // pred_check_branch
        %249 = sbr.rel (%p247) target = $region40
      $region39: #{simple_res_block.1} parent=5 // pred_region
        // Predicated region
        $region41: #{simple_res_block.1} parent=39 // pred_check
          %p250 = pneg %p35
        $region42: #{simple_res_block.1} parent=39 // pred_check_branch
          %252 = sbr.rel (%p250) target = $region44
        $region43: #{simple_res_block.1} parent=39 // pred_region
          %p253 = scmp.lt.s32.totalorder %s15, 1
          %s254 = scalar_select %p253, %s15, 1
          %s255 = smul.addr %s254, 8
          %s256 = scalar_lea.vmem %s0, %s255
        $region44: #{simple_res_block.1} parent=39 // pred_fallthru
          _
      $region40: #{simple_res_block.1} parent=5 // pred_fallthru
        _
      %p257 = scmp.le.s32.totalorder 1, %s15
      %p258 = scmp.lt.s32.totalorder %s15, 3
      %p259 = pnand %p257, %p258
      %p260 = pneg %p259
      // Predicated region
      $region45: #{simple_res_block.1} parent=5 // pred_check
        _
      $region46: #{simple_res_block.1} parent=5 // pred_check_branch
        %262 = sbr.rel (%p259) target = $region48
      $region47: #{simple_res_block.1} parent=5 // pred_region
        %s263 = ssub.s32 %s15, 1
        // Predicated region
        $region49: #{simple_res_block.1} parent=47 // pred_check
          %p264 = pneg %p104
        $region50: #{simple_res_block.1} parent=47 // pred_check_branch
          %266 = sbr.rel (%p264) target = $region52
        $region51: #{simple_res_block.1} parent=47 // pred_region
          %267 = dma.done [#allocation3], 1024
        $region52: #{simple_res_block.1} parent=47 // pred_fallthru
          _
        // Predicated region
        $region53: #{simple_res_block.1} parent=47 // pred_check
          %p268 = pneg %p146
        $region54: #{simple_res_block.1} parent=47 // pred_check_branch
          %270 = sbr.rel (%p268) target = $region56
        $region55: #{simple_res_block.1} parent=47 // pred_region
          %271 = dma.done [#allocation5], 1024
        $region56: #{simple_res_block.1} parent=47 // pred_fallthru
          _
        %p272 = scmp.lt.s32.totalorder %s20, 1
        %s273 = scalar_select %p272, %s20, 1
        %s274 = smul.addr %s273, 8
        %s275 = scalar_lea.vmem %s0, %s274
        %p276 = pneg %p41
        %p277 = pneg %p38
        %p278 = pneg %p62
        %p279 = pneg %p59
        %p280 = pneg %p83
        %p281 = pneg %p80
        %p282 = pneg %p104
        %p283 = pneg %p101
        %p284 = pneg %p125
        %p285 = pneg %p122
        %p286 = pneg %p146
        %p287 = pneg %p143
        %p288 = pneg %p167
        %p289 = pneg %p164
        %p290 = pneg %p193
        %p291 = pneg %p190
        %p292 = scmp.lt.s32.totalorder %s20, 1
        %s293 = scalar_select %p292, %s20, 1
        %s294 = smul.addr %s293, 8
        %s295 = scalar_lea.vmem %s7, %s294
        %p296 = scmp.lt.s32.totalorder %s20, 1
        %s297 = scalar_select %p296, %s20, 1
        %s298 = smul.addr %s297, 8
        %s299 = scalar_lea.vmem %s0, %s298
        %p300 = scmp.lt.s32.totalorder %s20, 1
        %s301 = scalar_select %p300, %s20, 1
        %s302 = smul.addr %s301, 8
        %s303 = scalar_lea.vmem %s7, %s302
        %v305 = vld [vmem:[%s299] sm:$0xff]
        %v306 = vld [vmem:[%s1] sm:$0x1]
        %v307 = vld [vmem:[%s2] sm:$0x1]
        %308 = vadd.xlane.f32.xlu0 %v305
        %v309 = vpop.xlane.xlu0 %308
        %v310 = vmul.f32 %v305, %v305
        %311 = vadd.xlane.f32.xlu0 %v310
        %v312 = vpop.xlane.xlu0 %311
        %v313 = vmul.f32 %v309, 0.03125
        %v314 = vmul.f32 %v312, 0.03125
        %v315 = vmul.f32 %v313, %v313
        %v316 = vsub.f32 %v314, %v315
        %v317 = vmax.f32 %v316, 0.0
        %v318 = vsub.f32 %v305, %v313
        %v319 = vadd.f32 %v317, 1e-05
        %v320 = vrsqrt.pop %v319
        %v321 = vmul.f32 %v318, %v320
        %v323 = vlaneseq
        %v324 = vshrl.u32 %v323, 7
        %v325 = vsub.s32 0, %v324
        %v326 = vrot.slane %v306, %v325
        %v328 = vmul.f32 %v321, %v326
        %v330 = vlaneseq
        %v331 = vshrl.u32 %v330, 7
        %v332 = vsub.s32 0, %v331
        %v333 = vrot.slane %v307, %v332
        %v335 = vadd.f32 %v328, %v333
        %v336 = vld [vmem:[#allocation2] sm:$0xf]
        %v337 = vld [vmem:[#allocation2 + $0x4] sm:$0xf]
        %v338 = vld [vmem:[#allocation2 + $0x8] sm:$0xf]
        %v339 = vld [vmem:[#allocation2 + $0xc] sm:$0xf]
        %v340 = vld [vmem:[#allocation2 + $0x10] sm:$0xf]
        %v341 = vld [vmem:[#allocation2 + $0x14] sm:$0xf]
        %v342 = vld [vmem:[#allocation2 + $0x18] sm:$0xf]
        %v343 = vld [vmem:[#allocation2 + $0x1c] sm:$0xf]
        %v344 = vld [vmem:[#allocation2 + $0x20] sm:$0xf]
        %v345 = vld [vmem:[#allocation2 + $0x24] sm:$0xf]
        %v346 = vld [vmem:[#allocation2 + $0x28] sm:$0xf]
        %v347 = vld [vmem:[#allocation2 + $0x2c] sm:$0xf]
        %v348 = vld [vmem:[#allocation2 + $0x30] sm:$0xf]
        %v349 = vld [vmem:[#allocation2 + $0x34] sm:$0xf]
        %v350 = vld [vmem:[#allocation2 + $0x38] sm:$0xf]
        %v351 = vld [vmem:[#allocation2 + $0x3c] sm:$0xf]
        %v352 = vpack.c.bf16 %v335, %v335
        %v353 = vld [vmem:[%s4] sm:$0x1]
        %v355 = vlaneseq
        %v356 = vshrl.u32 %v355, 7
        %v357 = vsub.s32 0, %v356
        %v358 = vrot.slane %v353, %v357
        %v376 = vunpack.c.l.b16 %v336
        %v377 = vunpack.c.l.b16 %v337
        %v378 = vunpack.c.l.b16 %v338
        %v379 = vunpack.c.l.b16 %v339
        %v380 = vunpack.c.l.b16 %v340
        %v381 = vunpack.c.l.b16 %v341
        %v382 = vunpack.c.l.b16 %v342
        %v383 = vunpack.c.l.b16 %v343
        %v384 = vunpack.c.l.b16 %v344
        %v385 = vunpack.c.l.b16 %v345
        %v386 = vunpack.c.l.b16 %v346
        %v387 = vunpack.c.l.b16 %v347
        %v388 = vunpack.c.l.b16 %v348
        %v389 = vunpack.c.l.b16 %v349
        %v390 = vunpack.c.l.b16 %v350
        %v391 = vunpack.c.l.b16 %v351
        %v392 = vpack.c.b16 %v377, %v376
        %v393 = vpack.c.b16 %v379, %v378
        %v394 = vpack.c.b16 %v381, %v380
        %v395 = vpack.c.b16 %v383, %v382
        %v396 = vpack.c.b16 %v385, %v384
        %v397 = vpack.c.b16 %v387, %v386
        %v398 = vpack.c.b16 %v389, %v388
        %v399 = vpack.c.b16 %v391, %v390
        %408 = vmatprep.subr.bf16.mxu0 0
        %409 = vmatpush1.bf16.msra.mxu0 %v392
        %410 = vmatprep.subr.bf16.mxu0 0
        %411 = vmatpush1.bf16.msra.mxu0 %v393
        %412 = vmatprep.subr.bf16.mxu0 0
        %413 = vmatpush1.bf16.msra.mxu0 %v394
        %414 = vmatprep.subr.bf16.mxu0 0
        %415 = vmatpush1.bf16.msra.mxu0 %v395
        %416 = vmatprep.subr.bf16.mxu0 0
        %417 = vmatpush1.bf16.msra.mxu0 %v396
        %418 = vmatprep.subr.bf16.mxu0 0
        %419 = vmatpush1.bf16.msra.mxu0 %v397
        %420 = vmatprep.subr.bf16.mxu0 0
        %421 = vmatpush1.bf16.msra.mxu0 %v398
        %422 = vmatprep.subr.bf16.mxu0 0
        %423 = vmatpush1.bf16.msra.mxu0 %v399
        %424 = vmatprep.subr.bf16.mxu0 0
        %425 = vmatpush1.bf16.msra.mxu0 0
        %426 = vmatprep.subr.bf16.mxu0 0
        %427 = vmatpush1.bf16.msra.mxu0 0
        %428 = vmatprep.subr.bf16.mxu0 0
        %429 = vmatpush1.bf16.msra.mxu0 0
        %430 = vmatprep.subr.bf16.mxu0 0
        %431 = vmatpush1.bf16.msra.mxu0 0
        %432 = vmatprep.subr.bf16.mxu0 0
        %433 = vmatpush1.bf16.msra.mxu0 0
        %434 = vmatprep.subr.bf16.mxu0 0
        %435 = vmatpush1.bf16.msra.mxu0 0
        %436 = vmatprep.subr.bf16.mxu0 0
        %437 = vmatpush1.bf16.msra.mxu0 0
        %438 = vmatprep.subr.bf16.mxu0 0
        %439 = vmatpush1.bf16.msra.mxu0 0
        %440 = vmatprep.mubr.bf16.mxu0 0
        %441 = vmatmul.mubr.bf16.gmra.mrb[0].mxu0 %v352
        %v442 = vpop.f32.mrb[0].mxu0
        %v443 = vadd.f32 %v358, %v442
        %v444 = vpop.f32.mrb[0].mxu0
        %v445 = vpop.f32.mrb[0].mxu0
        %v446 = vpop.f32.mrb[0].mxu0
        %447 = vdwg.mxu0
        %v448 = vmul.f32 %v443, 0.5
        %v449 = vmul.f32 %v443, 0.70710677
        %v450 = vand.u32 2147483647, %v449
        %v451 = vmul.f32 %v450, 0.3275911
        %v452 = vadd.f32 %v451, 1.0
        %v453 = vrcp.pop %v452
        %v454 = vmul.f32 1.0, %v453
        %v455 = vmul.f32 %v454, 1.0614054
        %v456 = vadd.f32 %v455, -1.4531521
        %v457 = vmul.f32 %v454, %v456
        %v458 = vadd.f32 %v457, 1.4214138
        %v459 = vmul.f32 %v454, %v458
        %v460 = vadd.f32 %v459, -0.28449672
        %v461 = vmul.f32 %v454, %v460
        %v462 = vadd.f32 %v461, 0.2548296
        %v463 = vmul.f32 %v454, %v462
        %v464 = vmul.f32 %v450, %v450
        %v465 = vsub.f32 0.0, %v464
        %v466 = vmul.f32 %v465, 1.442695
        %v467 = vpow.pop %v466
        %v468 = vmul.f32 %v463, %v467
        %v469 = vsub.f32 1.0, %v468
        %vm470 = vcmp.lt.f32.partialorder %v449, 0.0
        %v471 = vsub.f32 0.0, %v469
        %v472 = vsel %vm470, %v471, %v469
        %v473 = vadd.f32 %v472, 1.0
        %v474 = vmul.f32 %v448, %v473
        %v475 = vld [vmem:[#allocation4] sm:$0xf]
        %v476 = vld [vmem:[#allocation4 + $0x4] sm:$0xf]
        %v477 = vld [vmem:[#allocation4 + $0x8] sm:$0xf]
        %v478 = vld [vmem:[#allocation4 + $0xc] sm:$0xf]
        %v479 = vld [vmem:[#allocation4 + $0x10] sm:$0xf]
        %v480 = vld [vmem:[#allocation4 + $0x14] sm:$0xf]
        %v481 = vld [vmem:[#allocation4 + $0x18] sm:$0xf]
        %v482 = vld [vmem:[#allocation4 + $0x1c] sm:$0xf]
        %v483 = vld [vmem:[#allocation4 + $0x20] sm:$0xf]
        %v484 = vld [vmem:[#allocation4 + $0x24] sm:$0xf]
        %v485 = vld [vmem:[#allocation4 + $0x28] sm:$0xf]
        %v486 = vld [vmem:[#allocation4 + $0x2c] sm:$0xf]
        %v487 = vld [vmem:[#allocation4 + $0x30] sm:$0xf]
        %v488 = vld [vmem:[#allocation4 + $0x34] sm:$0xf]
        %v489 = vld [vmem:[#allocation4 + $0x38] sm:$0xf]
        %v490 = vld [vmem:[#allocation4 + $0x3c] sm:$0xf]
        %v491 = vpack.c.bf16 %v474, %v474
        %v508 = vunpack.c.l.b16 %v475
        %v509 = vunpack.c.l.b16 %v476
        %v510 = vunpack.c.l.b16 %v477
        %v511 = vunpack.c.l.b16 %v478
        %v512 = vunpack.c.l.b16 %v479
        %v513 = vunpack.c.l.b16 %v480
        %v514 = vunpack.c.l.b16 %v481
        %v515 = vunpack.c.l.b16 %v482
        %v516 = vunpack.c.l.b16 %v483
        %v517 = vunpack.c.l.b16 %v484
        %v518 = vunpack.c.l.b16 %v485
        %v519 = vunpack.c.l.b16 %v486
        %v520 = vunpack.c.l.b16 %v487
        %v521 = vunpack.c.l.b16 %v488
        %v522 = vunpack.c.l.b16 %v489
        %v523 = vunpack.c.l.b16 %v490
        %v524 = vpack.c.b16 %v509, %v508
        %v525 = vpack.c.b16 %v511, %v510
        %v526 = vpack.c.b16 %v513, %v512
        %v527 = vpack.c.b16 %v515, %v514
        %v528 = vpack.c.b16 %v517, %v516
        %v529 = vpack.c.b16 %v519, %v518
        %v530 = vpack.c.b16 %v521, %v520
        %v531 = vpack.c.b16 %v523, %v522
        %540 = vmatprep.subr.bf16.mxu0 0
        %541 = vmatpush1.bf16.msra.mxu0 %v524
        %542 = vmatprep.subr.bf16.mxu0 0
        %543 = vmatpush1.bf16.msra.mxu0 %v525
        %544 = vmatprep.subr.bf16.mxu0 0
        %545 = vmatpush1.bf16.msra.mxu0 %v526
        %546 = vmatprep.subr.bf16.mxu0 0
        %547 = vmatpush1.bf16.msra.mxu0 %v527
        %548 = vmatprep.subr.bf16.mxu0 0
        %549 = vmatpush1.bf16.msra.mxu0 %v528
        %550 = vmatprep.subr.bf16.mxu0 0
        %551 = vmatpush1.bf16.msra.mxu0 %v529
        %552 = vmatprep.subr.bf16.mxu0 0
        %553 = vmatpush1.bf16.msra.mxu0 %v530
        %554 = vmatprep.subr.bf16.mxu0 0
        %555 = vmatpush1.bf16.msra.mxu0 %v531
        %556 = vmatprep.subr.bf16.mxu0 0
        %557 = vmatpush1.bf16.msra.mxu0 0
        %558 = vmatprep.subr.bf16.mxu0 0
        %559 = vmatpush1.bf16.msra.mxu0 0
        %560 = vmatprep.subr.bf16.mxu0 0
        %561 = vmatpush1.bf16.msra.mxu0 0
        %562 = vmatprep.subr.bf16.mxu0 0
        %563 = vmatpush1.bf16.msra.mxu0 0
        %564 = vmatprep.subr.bf16.mxu0 0
        %565 = vmatpush1.bf16.msra.mxu0 0
        %566 = vmatprep.subr.bf16.mxu0 0
        %567 = vmatpush1.bf16.msra.mxu0 0
        %568 = vmatprep.subr.bf16.mxu0 0
        %569 = vmatpush1.bf16.msra.mxu0 0
        %570 = vmatprep.subr.bf16.mxu0 0
        %571 = vmatpush1.bf16.msra.mxu0 0
        %572 = vmatprep.mubr.bf16.mxu0 0
        %573 = vmatmul.mubr.bf16.gmra.mrb[0].mxu0 %v491
        %v574 = vpop.f32.mrb[0].mxu0
        %v575 = vadd.f32 0.0, %v574
        %v576 = vpop.f32.mrb[0].mxu0
        %v577 = vpop.f32.mrb[0].mxu0
        %v578 = vpop.f32.mrb[0].mxu0
        %579 = vdwg.mxu0
        %v580 = vadd.f32 %v335, %v575
        %v581 = vld [vmem:[%s6] sm:$0x1]
        %v583 = vlaneseq
        %v584 = vshrl.u32 %v583, 7
        %v585 = vsub.s32 0, %v584
        %v586 = vrot.slane %v581, %v585
        %v588 = vadd.f32 %v580, %v586
        %589 = vst [vmem:[%s303] sm:$0xff] %v588
        %p590 = scmp.lt.s32.totalorder %s20, 1
        %s591 = scalar_select %p590, %s20, 1
        %s592 = smul.addr %s591, 8
        %s593 = scalar_lea.vmem %s7, %s592
        // Predicated region
        $region57: #{simple_res_block.1} parent=47 // pred_check
          %p594 = pneg %p190
        $region58: #{simple_res_block.1} parent=47 // pred_check_branch
          %596 = sbr.rel (%p594) target = $region60
        $region59: #{simple_res_block.1} parent=47 // pred_region
          _
        $region60: #{simple_res_block.1} parent=47 // pred_fallthru
          _
      $region48: #{simple_res_block.1} parent=5 // pred_fallthru
        _
      %p597 = scmp.le.s32.totalorder 2, %s15
      // Predicated region
      $region61: #{simple_res_block.1} parent=5 // pred_check
        %p598 = pneg %p597
      $region62: #{simple_res_block.1} parent=5 // pred_check_branch
        %600 = sbr.rel (%p598) target = $region64
      $region63: #{simple_res_block.1} parent=5 // pred_region
        %s601 = ssub.s32 %s15, 2
        // Predicated region
        $region65: #{simple_res_block.1} parent=63 // pred_check
          %p602 = pneg %p196
        $region66: #{simple_res_block.1} parent=63 // pred_check_branch
          %604 = sbr.rel (%p602) target = $region68
        $region67: #{simple_res_block.1} parent=63 // pred_region
          %p605 = scmp.lt.s32.totalorder %s21, 1
          %s606 = scalar_select %p605, %s21, 1
          %s607 = smul.addr %s606, 8
          %s608 = scalar_lea.vmem %s7, %s607
        $region68: #{simple_res_block.1} parent=63 // pred_fallthru
          _
      $region64: #{simple_res_block.1} parent=5 // pred_fallthru
        _
    $region6: #{simple_res_block.1} parent=1 // loop_footer
      %s19 = sadd.s32 1, %s15
    $region7: #{simple_res_block.1} parent=1 // loop_footer_branch
      %14 = sbr.rel target = $region3
    $region8: #{simple_res_block.1} parent=1 // loop_exit
      _
    %609 = vsyncpa [#allocation3], 1
    %s610 = scalar_lea.sflag [#allocation3], 1
    %611 = vsyncpa %s610, 1
    %612 = vsyncpa [#allocation5], 1

</llo_original>
